<compile_context>
chip_gen: v5e
topology: v5e:2x2
jax: 0.10.0
libtpu: 0.0.40
codegen_flags: <defaults>
</compile_context>

<pallas_src>
import functools

import jax
import jax.numpy as jnp
from jax.experimental import pallas as pl
from jax.experimental.pallas import tpu as pltpu


_LANE = 128
_MIN_TOTAL_GRID_STEPS = 4   # let v7x's 2 TensorCores each get >= 2 grid steps


def _vmem_budgets():
    """Generation-aware VMEM request + tile budget.

    v5e/v6e: 128 MiB VMEM per TensorCore -> limit 80 MiB, tile budget 56 MiB.
    v7x:      64 MiB per TensorCore      -> limit 40 MiB, tile budget 28 MiB.
    The gap between budget and limit covers the f32 temporaries' slack and
    Mosaic internal scratch.
    """
    try:
        cap = pltpu.get_tpu_info().vmem_capacity_bytes
    except Exception:  # conservative fallback (v7x-sized)
        cap = 64 * 1024 * 1024
    limit = min((cap * 5) // 8, 96 * 1024 * 1024)
    budget = (limit * 7) // 10
    return int(limit), int(budget)


def _tile_bytes(tile_s, c_in, c_out, in_item, out_item):
    # Double-buffered input + output tiles, double-buffered (tiny) weight,
    # plus single-buffered f32 matmul-result / LeakyReLU temporaries.
    return (2 * tile_s * (c_in * in_item + c_out * out_item)
            + 2 * c_in * c_out * in_item
            + 2 * c_out * tile_s * 4)


def _choose_spatial_tile(hw, n_batch, c_in, c_out, in_item, out_item,
                         target, budget):
    """Largest lane-multiple tile <= target that fits the VMEM budget.

    No divisibility requirement on hw: the last grid block may be ragged
    (Pallas masks out-of-bounds lanes on write). Tile is additionally capped so
    the total grid keeps at least _MIN_TOTAL_GRID_STEPS steps (v7x megacore).
    """
    min_tile = hw if hw < _LANE else _LANE
    if _tile_bytes(min_tile, c_in, c_out, in_item, out_item) > budget:
        raise ValueError(
            "conv1_block_1: even the minimum spatial tile exceeds the VMEM "
            f"budget ({budget} bytes) for C_in={c_in}, C_out={c_out}.")
    if hw <= _LANE:
        return hw  # block last dim equals the full array dim -> always valid

    # Budget-constrained maximum (affine solve of _tile_bytes(t) <= budget).
    per_pixel = 2 * (c_in * in_item + c_out * out_item) + 2 * c_out * 4
    fixed = 2 * c_in * c_out * in_item
    budget_tile = ((budget - fixed) // per_pixel // _LANE) * _LANE

    tile = min((hw // _LANE) * _LANE,                  # stay within the image
               max(_LANE, (target // _LANE) * _LANE),  # requested target
               max(_LANE, budget_tile))                # VMEM budget

    def _cdiv(a, b):
        return -(-a // b)

    # Keep enough total grid steps so dimension_semantics=("parallel","parallel")
    # can actually shard across v7x's two TensorCores.
    if n_batch * _cdiv(hw, tile) < _MIN_TOTAL_GRID_STEPS:
        want_blocks = _cdiv(_MIN_TOTAL_GRID_STEPS, n_batch)
        tile = min(tile, max(_LANE, (hw // want_blocks // _LANE) * _LANE))
    return tile


def _conv1x1_lrelu_kernel(x_ref, w_ref, o_ref, *, negative_slope):
    # x_ref: (C_in, tile_s)   -- one image's in-channels, pixel tile (lanes)
    # w_ref: (C_out, C_in)    -- full weight, resident every grid step
    # o_ref: (C_out, tile_s)
    y = jnp.dot(w_ref[...], x_ref[...],
                preferred_element_type=jnp.float32,
                precision=jax.lax.Precision.HIGHEST)
    if 0.0 <= negative_slope <= 1.0:
        # LeakyReLU == max(y, slope*y) for slope in [0, 1]: one vmul + one vmax.
        y = jnp.maximum(y, negative_slope * y)
    else:
        y = jnp.where(y > 0, y, negative_slope * y)
    o_ref[...] = y.astype(o_ref.dtype)


def conv1_block_1_forward(x_nchw, weight, *, negative_slope=0.1,
                          target_tile=128 * 1024):
    """1x1 conv (bias=False) + LeakyReLU(0.1), matching conv1_block_1.forward.

    x_nchw: (N, C_in, H, W); weight: (C_out, C_in, 1, 1). Output dtype = input
    dtype (no wrapper-side casts -> no extra HBM passes).
    """
    N, C_in, H, W = x_nchw.shape
    C_out = weight.shape[0]
    out_dtype = x_nchw.dtype

    HW = H * W
    x = x_nchw.reshape(N, C_in, HW)   # free reshape, no HBM transpose pass
    w = weight.reshape(C_out, C_in)

    vmem_limit, tile_budget = _vmem_budgets()
    in_item = jnp.dtype(x.dtype).itemsize
    out_item = jnp.dtype(out_dtype).itemsize
    tile_s = _choose_spatial_tile(HW, N, C_in, C_out, in_item, out_item,
                                  target_tile, tile_budget)
    num_s_blocks = -(-HW // tile_s)   # ceil: ragged last block is write-masked

    kernel = functools.partial(_conv1x1_lrelu_kernel,
                               negative_slope=float(negative_slope))

    out = pl.pallas_call(
        kernel,
        out_shape=jax.ShapeDtypeStruct((N, C_out, HW), out_dtype),
        grid_spec=pltpu.PrefetchScalarGridSpec(
            num_scalar_prefetch=0,
            grid=(N, num_s_blocks),
            in_specs=[
                # Batch dim squeezed; C_in equals the full dim; tile_s % 128 == 0
                # (or equals HW when HW < 128).
                pl.BlockSpec((None, C_in, tile_s), lambda n, s: (n, 0, s)),
                # Full weight, constant index_map (stays resident each step).
                pl.BlockSpec((C_out, C_in), lambda n, s: (0, 0)),
            ],
            out_specs=pl.BlockSpec((None, C_out, tile_s), lambda n, s: (n, 0, s)),
        ),
        compiler_params=pltpu.CompilerParams(
            # Both axes independent -> shard across v7x's 2 TensorCores;
            # neutral on single-TC v5e/v6e.
            dimension_semantics=("parallel", "parallel"),
            vmem_limit_bytes=vmem_limit,
        ),
    )(x, w)

    return out.reshape(N, C_out, H, W)   # free reshape back to NCHW


if __name__ == "__main__":
    # Small deterministic example consistent with the module's forward.
    N, C_in, C_out, H, W = 2, 4, 8, 16, 16

    key = jax.random.PRNGKey(0)
    kx, kw = jax.random.split(key)
    x = jax.random.normal(kx, (N, C_in, H, W), dtype=jnp.float32)
    # Shape matches nn.Conv2d(ch_in, ch_out, 1, bias=False).weight.
    weight = jax.random.normal(kw, (C_out, C_in, 1, 1), dtype=jnp.float32) * (
        1.0 / (C_in ** 0.5))

    out = jax.block_until_ready(conv1_block_1_forward(x, weight))

    # Plain-JAX reference of the same math (same precision setting).
    ref = jnp.einsum("nchw,oc->nohw", x, weight.reshape(C_out, C_in),
                     precision=jax.lax.Precision.HIGHEST)
    ref = jnp.where(ref > 0, ref, 0.1 * ref)
    assert out.shape == (N, C_out, H, W)
    assert jnp.allclose(out, ref, atol=1e-4, rtol=1e-4), (
        float(jnp.max(jnp.abs(out - ref))))

    print("KERNEL_OK")
</pallas_src>

<mosaic_0001>
module attributes {stable_mosaic.version = 11 : i64} {
  func.func @_conv1x1_lrelu_kernel(%arg0: i32, %arg1: i32, %arg2: memref<1x4x128xf32, #tpu.memory_space<vmem>>, %arg3: memref<8x4xf32, #tpu.memory_space<vmem>>, %arg4: memref<1x8x128xf32, #tpu.memory_space<vmem>>) attributes {dimension_semantics = [#tpu.dimension_semantics<parallel>, #tpu.dimension_semantics<parallel>], iteration_bounds = array<i64: 2, 2>, scalar_prefetch = 0 : i64, scratch_operands = 0 : i64, tpu.core_type = #tpu.core_type<tc>, window_params = [{transform_indices = @transform_0, window_bounds = array<i64: 1, 4, 128>}, {pipeline_mode = #tpu.pipeline_mode<synchronous>, transform_indices = @transform_1, window_bounds = array<i64: 8, 4>}, {transform_indices = @transform_2, window_bounds = array<i64: 1, 8, 128>}]} {
    %c0 = arith.constant 0 : index
    %c0_0 = arith.constant 0 : index
    %0 = vector.load %arg3[%c0, %c0_0] : memref<8x4xf32, #tpu.memory_space<vmem>>, vector<8x4xf32>
    %c0_1 = arith.constant 0 : index
    %c0_2 = arith.constant 0 : index
    %c0_3 = arith.constant 0 : index
    %1 = vector.load %arg2[%c0_1, %c0_2, %c0_3] : memref<1x4x128xf32, #tpu.memory_space<vmem>>, vector<1x4x128xf32>
    %2 = vector.shape_cast %1 : vector<1x4x128xf32> to vector<4x128xf32>
    %cst = arith.constant dense<0.000000e+00> : vector<8x128xf32>
    %3 = tpu.matmul %0, %2, %cst {dimension_numbers = #tpu.dot_dimension_numbers<[1], [0], [0], [1], [0, 0, 1, 1], [], []>, precision = #tpu.contract_precision<fp32>} : vector<8x4xf32>, vector<4x128xf32>, vector<8x128xf32> -> vector<8x128xf32>
    %cst_4 = arith.constant 1.000000e-01 : f32
    %4 = vector.broadcast %cst_4 : f32 to vector<8x128xf32>
    %5 = arith.mulf %4, %3 : vector<8x128xf32>
    %6 = arith.maximumf %3, %5 : vector<8x128xf32>
    %c0_5 = arith.constant 0 : index
    %c0_6 = arith.constant 0 : index
    %c0_7 = arith.constant 0 : index
    %7 = vector.load %arg4[%c0_5, %c0_6, %c0_7] : memref<1x8x128xf32, #tpu.memory_space<vmem>>, vector<1x8x128xf32>
    %8 = vector.shape_cast %7 : vector<1x8x128xf32> to vector<8x128xf32>
    %9 = vector.shape_cast %6 : vector<8x128xf32> to vector<1x8x128xf32>
    tpu.vector_store %arg4[%c0_5, %c0_6, %c0_7], %9 {strides = array<i32>} : memref<1x8x128xf32, #tpu.memory_space<vmem>>, vector<1x8x128xf32>,
    return
  }
  func.func @transform_0(%arg0: i32, %arg1: i32) -> (i32, i32, i32) {
    %c0_i32 = arith.constant 0 : i32
    %c0_i32_0 = arith.constant 0 : i32
    return %arg0, %c0_i32, %arg1 : i32, i32, i32
  }
  func.func @transform_1(%arg0: i32, %arg1: i32) -> (i32, i32) {
    %c0_i32 = arith.constant 0 : i32
    %c0_i32_0 = arith.constant 0 : i32
    %c0_i32_1 = arith.constant 0 : i32
    return %c0_i32, %c0_i32_0 : i32, i32
  }
  func.func @transform_2(%arg0: i32, %arg1: i32) -> (i32, i32, i32) {
    %c0_i32 = arith.constant 0 : i32
    %c0_i32_0 = arith.constant 0 : i32
    return %arg0, %c0_i32, %arg1 : i32, i32, i32
  }
}

</mosaic_0001>

<llo_original>
// kernel: tpu_custom_call.1
$region0: #{tpu_custom_call.1}
  #allocation0 [shape = 'u32[]', space=smem, size = 0x4, offset = 0x4, fixed_abs, tag = 'smem constant byte address 0x4 - core index']
  #allocation1 [shape = 'u32[72,128]{1,0:T(1,128)}', space=vmem, size = 0x9000, scoped, tag = 'internal scratch']
  %s0 = inlined_call_operand.hbm [shape: f32[2,4,256], index: 0, kind: input, shape index: {}]
  %s1 = inlined_call_operand.vmem [shape: f32[8,4], index: 1, kind: input, shape index: {}]
  %s2 = inlined_call_operand.hbm [shape: f32[2,8,256], index: 2, kind: output, shape index: {}]
  %s3 = sld [smem:[#allocation0]]
  $region45: #{tpu_custom_call.1} parent=0
    _
  %s5 = ssub.s32 1, %s3
  %s6 = scalar_select 0, %s5, %s3
  $region1: #{tpu_custom_call.1} parent=0
    #allocation2 [shape = 'u8[4096]{0}', space=vmem, size = 0x1000, scoped, tag = 'input window, operand 0']
    #allocation3 [shape = 's32[2]{0}', space=sflag, size = 0x8, scoped, tag = 'scoped memory for tpu_custom_call.1']
    #allocation4 [shape = 's32[2]{0}', space=sflag, size = 0x8, scoped, tag = 'scoped memory for tpu_custom_call.1']
    #allocation5 [shape = 'u8[8192]{0}', space=vmem, size = 0x2000, scoped, tag = 'output window, operand 0']
    %7 = vsyncpa [#allocation3], 0
    %s8 = scalar_lea.sflag [#allocation3], 1
    %9 = vsyncpa %s8, 0
    %10 = vsyncpa [#allocation4], 0
    %s11 = scalar_lea.sflag [#allocation4], 1
    %12 = vsyncpa %s11, 0
    loop: start=0, step=1, limit=6
    $region2: #{tpu_custom_call.1} parent=1 // loop_pre_header
      _
    $region3: #{tpu_custom_call.1} parent=1 // loop_header
      %s14 = sphi 0, %s18
      %p15 = scmp.ge.s32.totalorder %s14, 6
      %s21 = sphi 0, %s33
      %s22 = sphi 0, %s29
      %s23 = sphi 0, %s21
      %s24 = sphi 0, %s22
      %s25 = sphi 0, %s23
      %s26 = sphi 0, %s24
      %s38 = sphi 0, %s40
      %s41 = sphi 0, %s38
      %s42 = sphi 0, %s41
      %s58 = sphi 0, %s42
      %s62 = sphi 0, %s62
      %s64 = sphi 0, %s62
      %s65 = sphi 0, %s64
      %s79 = sphi 0, %s65
      %s87 = sphi 0, %s89
      %s90 = sphi 0, %s87
      %s91 = sphi 0, %s90
      %s107 = sphi 0, %s91
    $region4: #{tpu_custom_call.1} parent=1 // loop_header_branch
      %17 = sbr.rel (%p15) target = $region8
    $region5: #{tpu_custom_call.1} parent=1 // loop_body
      %s19 = ssub.s32 %s14, 1
      %s20 = ssub.s32 %s14, 2
      %s27 = sadd.s32 1, %s22
      %p28 = scmp.ge.s32.totalorder %s27, 2
      %s29 = scalar_select %p28, 0, %s27
      %s30 = sadd.s32 1, %s21
      %s31 = scalar_select %p28, %s30, %s21
      %p32 = scmp.ge.s32.totalorder %s31, 2
      %s33 = scalar_select %p32, 0, %s31
      %s34 = ssub.s32 %s21, %s33
      %s35 = ssub.s32 %s22, %s29
      %s36 = sor.u32 %s34, %s35
      %p37 = scmp.eq.s32.totalorder %s36, 0
      %s39 = sadd.s32 %s38, 1
      %s40 = scalar_select %p37, %s38, %s39
      %p43 = pneg %p37
      %p44 = scmp.eq.s32.totalorder %s14, 3
      %p45 = por %p43, %p44
      %p46 = scmp.ne.s32.totalorder %s38, %s41
      %p47 = scmp.eq.s32.totalorder %s14, 0
      %p48 = por %p46, %p47
      %p49 = scmp.ne.s32.totalorder %s38, %s41
      %p50 = scmp.eq.s32.totalorder %s19, 3
      %p51 = por %p49, %p50
      %p52 = scmp.ne.s32.totalorder %s41, %s42
      %p53 = scmp.eq.s32.totalorder %s19, 0
      %p54 = por %p52, %p53
      %p55 = scmp.ne.s32.totalorder %s41, %s42
      %p56 = scmp.eq.s32.totalorder %s20, 3
      %p57 = por %p55, %p56
      %p59 = scmp.ne.s32.totalorder %s42, %s58
      %p60 = scmp.eq.s32.totalorder %s20, 0
      %p61 = por %p59, %p60
      %s63 = sadd.s32 %s62, 1
      %p66 = scmp.eq.s32.totalorder %s14, 3
      %p67 = scmp.ne.s32.totalorder %s62, %s64
      %p68 = scmp.eq.s32.totalorder %s14, 0
      %p69 = por %p67, %p68
      %p70 = scmp.ne.s32.totalorder %s62, %s64
      %p71 = scmp.eq.s32.totalorder %s19, 3
      %p72 = por %p70, %p71
      %p73 = scmp.ne.s32.totalorder %s64, %s65
      %p74 = scmp.eq.s32.totalorder %s19, 0
      %p75 = por %p73, %p74
      %p76 = scmp.ne.s32.totalorder %s64, %s65
      %p77 = scmp.eq.s32.totalorder %s20, 3
      %p78 = por %p76, %p77
      %p80 = scmp.ne.s32.totalorder %s65, %s79
      %p81 = scmp.eq.s32.totalorder %s20, 0
      %p82 = por %p80, %p81
      %s83 = ssub.s32 %s21, %s33
      %s84 = ssub.s32 %s22, %s29
      %s85 = sor.u32 %s83, %s84
      %p86 = scmp.eq.s32.totalorder %s85, 0
      %s88 = sadd.s32 %s87, 1
      %s89 = scalar_select %p86, %s87, %s88
      %p92 = pneg %p86
      %p93 = scmp.eq.s32.totalorder %s14, 3
      %p94 = por %p92, %p93
      %p95 = scmp.ne.s32.totalorder %s87, %s90
      %p96 = scmp.eq.s32.totalorder %s14, 0
      %p97 = por %p95, %p96
      %p98 = scmp.ne.s32.totalorder %s87, %s90
      %p99 = scmp.eq.s32.totalorder %s19, 3
      %p100 = por %p98, %p99
      %p101 = scmp.ne.s32.totalorder %s90, %s91
      %p102 = scmp.eq.s32.totalorder %s19, 0
      %p103 = por %p101, %p102
      %p104 = scmp.ne.s32.totalorder %s90, %s91
      %p105 = scmp.eq.s32.totalorder %s20, 3
      %p106 = por %p104, %p105
      %p108 = scmp.ne.s32.totalorder %s91, %s107
      %p109 = scmp.eq.s32.totalorder %s20, 0
      %p110 = por %p108, %p109
      %p111 = scmp.le.s32.totalorder 1, %s14
      %p112 = scmp.lt.s32.totalorder %s14, 5
      %p113 = pnand %p111, %p112
      %p114 = pneg %p113
      // Predicated region
      $region9: #{tpu_custom_call.1} parent=5 // pred_check
        _
      $region10: #{tpu_custom_call.1} parent=5 // pred_check_branch
        %116 = sbr.rel (%p113) target = $region12
      $region11: #{tpu_custom_call.1} parent=5 // pred_region
        %s117 = ssub.s32 %s14, 1
        // Predicated region
        $region13: #{tpu_custom_call.1} parent=11 // pred_check
          %p118 = pneg %p75
        $region14: #{tpu_custom_call.1} parent=11 // pred_check_branch
          %120 = sbr.rel (%p118) target = $region16
        $region15: #{tpu_custom_call.1} parent=11 // pred_region
          _
        $region16: #{tpu_custom_call.1} parent=11 // pred_fallthru
          _
      $region12: #{tpu_custom_call.1} parent=5 // pred_fallthru
        _
      %p121 = scmp.lt.s32.totalorder %s14, 4
      // Predicated region
      $region17: #{tpu_custom_call.1} parent=5 // pred_check
        %p122 = pneg %p121
      $region18: #{tpu_custom_call.1} parent=5 // pred_check_branch
        %124 = sbr.rel (%p122) target = $region20
      $region19: #{tpu_custom_call.1} parent=5 // pred_region
        // Predicated region
        $region21: #{tpu_custom_call.1} parent=19 // pred_check
          %p125 = pneg %p48
        $region22: #{tpu_custom_call.1} parent=19 // pred_check_branch
          %127 = sbr.rel (%p125) target = $region24
        $region23: #{tpu_custom_call.1} parent=19 // pred_region
          %s128 = sand.u32 %s38, 1
          %s129 = scalar_lea.sflag [#allocation3], %s128
          %s130 = sand.u32 %s38, 1
          %s131 = smul.addr %s130, 4
          %s132 = scalar_lea.vmem [#allocation2], %s131
          %134 = vsyncadd %s129, 0
          %s135 = smul.addr %s21, 2
          %s136 = sadd.s32 %s22, %s135
          %s137 = smul.addr %s136, 4
          %s138 = scalar_lea.hbm %s0, %s137
          %s140 = sshll.u32 %s138, 4
          %s141 = int_to_ptr.hbm [resolvable:$true] %s140
          %s142 = sshll.u32 %s132, 4
          %s143 = int_to_ptr.vmem [resolvable:$true] %s142
          %145 = dma.hbm_to_vmem [thread:$0]  %s141, 64, %s143, %s129
        $region24: #{tpu_custom_call.1} parent=19 // pred_fallthru
          _
      $region20: #{tpu_custom_call.1} parent=5 // pred_fallthru
        _
      %p146 = scmp.le.s32.totalorder 1, %s14
      %p147 = scmp.lt.s32.totalorder %s14, 5
      %p148 = pnand %p146, %p147
      %p149 = pneg %p148
      // Predicated region
      $region25: #{tpu_custom_call.1} parent=5 // pred_check
        _
      $region26: #{tpu_custom_call.1} parent=5 // pred_check_branch
        %151 = sbr.rel (%p148) target = $region28
      $region27: #{tpu_custom_call.1} parent=5 // pred_region
        %s152 = ssub.s32 %s14, 1
        %s153 = sand.u32 %s41, 1
        %s154 = scalar_lea.sflag [#allocation3], %s153
        %s155 = sand.u32 %s41, 1
        %s156 = smul.addr %s155, 4
        %s157 = scalar_lea.vmem [#allocation2], %s156
        // Predicated region
        $region29: #{tpu_custom_call.1} parent=27 // pred_check
          %p158 = pneg %p54
        $region30: #{tpu_custom_call.1} parent=27 // pred_check_branch
          %160 = sbr.rel (%p158) target = $region32
        $region31: #{tpu_custom_call.1} parent=27 // pred_region
          %162 = dma.done %s154, 64
        $region32: #{tpu_custom_call.1} parent=27 // pred_fallthru
          _
        %s163 = sand.u32 %s41, 1
        %s164 = scalar_lea.sflag [#allocation3], %s163
        %s165 = sand.u32 %s41, 1
        %s166 = smul.addr %s165, 4
        %s167 = scalar_lea.vmem [#allocation2], %s166
        %p168 = pneg %p54
        %p169 = pneg %p51
        %p170 = pneg %p75
        %p171 = pneg %p72
        %p172 = pneg %p103
        %p173 = pneg %p100
        %s174 = sand.u32 %s90, 1
        %s175 = scalar_lea.sflag [#allocation4], %s174
        %s176 = sand.u32 %s90, 1
        %s177 = smul.addr %s176, 8
        %s178 = scalar_lea.vmem [#allocation5], %s177
        %v179 = vld [vmem:[%s1] sm:$0xff]
        %v180 = vld [vmem:[%s157] sm:$0xf]
        %vm181 = vcmask 31744
        %v183 = vsel %vm181, %v179, 0
        %vm185 = vcmask 1043456
        %v187 = vsel %vm185, %v180, 0
        %189 = vmatpush.msra.mxu0 0.0
        %190 = vmatpush.msra.mxu0 0.0
        %191 = vmatpush.msra.mxu0 0.0
        %192 = vmatpush.msra.mxu0 0.0
        %193 = vmatpush.msra.mxu0 0.0
        %194 = vmatpush.msra.mxu0 0.0
        %195 = vmatpush.msra.mxu0 0.0
        %196 = vmatpush.msra.mxu0 0.0
        %197 = vmatpush.msra.mxu0 0.0
        %198 = vmatpush.msra.mxu0 0.0
        %199 = vmatpush.msra.mxu0 0.0
        %200 = vmatpush.msra.mxu0 0.0
        %201 = vmatpush.msra.mxu0 0.0
        %202 = vmatpush.msra.mxu0 0.0
        %203 = vmatpush.msra.mxu0 0.0
        %v204 = vand.u32 %v187, 4294901760
        %205 = vmatpush.msra.mxu0 %v204
        %v206 = vand.u32 %v183, 4294901760
        %v207 = vsub.f32 %v183, %v206
        %v208 = vand.u32 %v207, 4294901760
        %v209 = vsub.f32 %v207, %v208
        %v210 = vand.u32 %v209, 4294901760
        %211 = vmatmul.f32.gmra.mxu0 %v210
        %v212 = vpop.f32.mrf.mxu0
        %v213 = vadd.f32 0.0, %v212
        %214 = vdwg.mxu0
        %215 = vmatpush.msra.mxu0 0.0
        %216 = vmatpush.msra.mxu0 0.0
        %217 = vmatpush.msra.mxu0 0.0
        %218 = vmatpush.msra.mxu0 0.0
        %219 = vmatpush.msra.mxu0 0.0
        %220 = vmatpush.msra.mxu0 0.0
        %221 = vmatpush.msra.mxu0 0.0
        %222 = vmatpush.msra.mxu0 0.0
        %223 = vmatpush.msra.mxu0 0.0
        %224 = vmatpush.msra.mxu0 0.0
        %225 = vmatpush.msra.mxu0 0.0
        %226 = vmatpush.msra.mxu0 0.0
        %227 = vmatpush.msra.mxu0 0.0
        %228 = vmatpush.msra.mxu0 0.0
        %229 = vmatpush.msra.mxu0 0.0
        %v230 = vand.u32 %v187, 4294901760
        %v231 = vsub.f32 %v187, %v230
        %v232 = vand.u32 %v231, 4294901760
        %v233 = vsub.f32 %v231, %v232
        %v234 = vand.u32 %v233, 4294901760
        %235 = vmatpush.msra.mxu0 %v234
        %v236 = vand.u32 %v183, 4294901760
        %237 = vmatmul.f32.gmra.mxu0 %v236
        %v238 = vpop.f32.mrf.mxu0
        %v239 = vadd.f32 %v213, %v238
        %240 = vdwg.mxu0
        %241 = vmatpush.msra.mxu0 0.0
        %242 = vmatpush.msra.mxu0 0.0
        %243 = vmatpush.msra.mxu0 0.0
        %244 = vmatpush.msra.mxu0 0.0
        %245 = vmatpush.msra.mxu0 0.0
        %246 = vmatpush.msra.mxu0 0.0
        %247 = vmatpush.msra.mxu0 0.0
        %248 = vmatpush.msra.mxu0 0.0
        %249 = vmatpush.msra.mxu0 0.0
        %250 = vmatpush.msra.mxu0 0.0
        %251 = vmatpush.msra.mxu0 0.0
        %252 = vmatpush.msra.mxu0 0.0
        %253 = vmatpush.msra.mxu0 0.0
        %254 = vmatpush.msra.mxu0 0.0
        %255 = vmatpush.msra.mxu0 0.0
        %v256 = vand.u32 %v187, 4294901760
        %v257 = vsub.f32 %v187, %v256
        %258 = vmatpush.msra.mxu0 %v257
        %v259 = vand.u32 %v183, 4294901760
        %v260 = vsub.f32 %v183, %v259
        %261 = vmatmul.f32.gmra.mxu0 %v260
        %v262 = vpop.f32.mrf.mxu0
        %v263 = vadd.f32 %v239, %v262
        %264 = vdwg.mxu0
        %265 = vmatpush.msra.mxu0 0.0
        %266 = vmatpush.msra.mxu0 0.0
        %267 = vmatpush.msra.mxu0 0.0
        %268 = vmatpush.msra.mxu0 0.0
        %269 = vmatpush.msra.mxu0 0.0
        %270 = vmatpush.msra.mxu0 0.0
        %271 = vmatpush.msra.mxu0 0.0
        %272 = vmatpush.msra.mxu0 0.0
        %273 = vmatpush.msra.mxu0 0.0
        %274 = vmatpush.msra.mxu0 0.0
        %275 = vmatpush.msra.mxu0 0.0
        %276 = vmatpush.msra.mxu0 0.0
        %277 = vmatpush.msra.mxu0 0.0
        %278 = vmatpush.msra.mxu0 0.0
        %279 = vmatpush.msra.mxu0 0.0
        %v280 = vand.u32 %v187, 4294901760
        %281 = vmatpush.msra.mxu0 %v280
        %v282 = vand.u32 %v183, 4294901760
        %v283 = vsub.f32 %v183, %v282
        %v284 = vand.u32 %v283, 4294901760
        %285 = vmatmul.f32.gmra.mxu0 %v284
        %v286 = vpop.f32.mrf.mxu0
        %v287 = vadd.f32 %v263, %v286
        %288 = vdwg.mxu0
        %289 = vmatpush.msra.mxu0 0.0
        %290 = vmatpush.msra.mxu0 0.0
        %291 = vmatpush.msra.mxu0 0.0
        %292 = vmatpush.msra.mxu0 0.0
        %293 = vmatpush.msra.mxu0 0.0
        %294 = vmatpush.msra.mxu0 0.0
        %295 = vmatpush.msra.mxu0 0.0
        %296 = vmatpush.msra.mxu0 0.0
        %297 = vmatpush.msra.mxu0 0.0
        %298 = vmatpush.msra.mxu0 0.0
        %299 = vmatpush.msra.mxu0 0.0
        %300 = vmatpush.msra.mxu0 0.0
        %301 = vmatpush.msra.mxu0 0.0
        %302 = vmatpush.msra.mxu0 0.0
        %303 = vmatpush.msra.mxu0 0.0
        %v304 = vand.u32 %v187, 4294901760
        %v305 = vsub.f32 %v187, %v304
        %v306 = vand.u32 %v305, 4294901760
        %307 = vmatpush.msra.mxu0 %v306
        %v308 = vand.u32 %v183, 4294901760
        %309 = vmatmul.f32.gmra.mxu0 %v308
        %v310 = vpop.f32.mrf.mxu0
        %v311 = vadd.f32 %v287, %v310
        %312 = vdwg.mxu0
        %313 = vmatpush.msra.mxu0 0.0
        %314 = vmatpush.msra.mxu0 0.0
        %315 = vmatpush.msra.mxu0 0.0
        %316 = vmatpush.msra.mxu0 0.0
        %317 = vmatpush.msra.mxu0 0.0
        %318 = vmatpush.msra.mxu0 0.0
        %319 = vmatpush.msra.mxu0 0.0
        %320 = vmatpush.msra.mxu0 0.0
        %321 = vmatpush.msra.mxu0 0.0
        %322 = vmatpush.msra.mxu0 0.0
        %323 = vmatpush.msra.mxu0 0.0
        %324 = vmatpush.msra.mxu0 0.0
        %325 = vmatpush.msra.mxu0 0.0
        %326 = vmatpush.msra.mxu0 0.0
        %327 = vmatpush.msra.mxu0 0.0
        %v328 = vand.u32 %v187, 4294901760
        %329 = vmatpush.msra.mxu0 %v328
        %v330 = vand.u32 %v183, 4294901760
        %331 = vmatmul.f32.gmra.mxu0 %v330
        %v332 = vpop.f32.mrf.mxu0
        %v333 = vadd.f32 %v311, %v332
        %334 = vdwg.mxu0
        %v335 = vmul.f32 %v333, 0.1
        %v336 = vmax.f32 %v333, %v335
        %337 = vst [vmem:[%s178] sm:$0xff] %v336
        %s338 = sand.u32 %s90, 1
        %s339 = scalar_lea.sflag [#allocation4], %s338
        %s340 = sand.u32 %s90, 1
        %s341 = smul.addr %s340, 8
        %s342 = scalar_lea.vmem [#allocation5], %s341
        // Predicated region
        $region33: #{tpu_custom_call.1} parent=27 // pred_check
          %p343 = pneg %p100
        $region34: #{tpu_custom_call.1} parent=27 // pred_check_branch
          %345 = sbr.rel (%p343) target = $region36
        $region35: #{tpu_custom_call.1} parent=27 // pred_region
          %347 = vsyncadd %s339, 0
          %s348 = smul.addr %s23, 2
          %s349 = sadd.s32 %s24, %s348
          %s350 = smul.addr %s349, 8
          %s351 = scalar_lea.hbm %s2, %s350
          %s353 = sshll.u32 %s342, 4
          %s354 = int_to_ptr.vmem [resolvable:$true] %s353
          %s355 = sshll.u32 %s351, 4
          %s356 = int_to_ptr.hbm [resolvable:$true] %s355
          %358 = dma.vmem_to_hbm [thread:$0]  %s354, 128, %s356, %s339
        $region36: #{tpu_custom_call.1} parent=27 // pred_fallthru
          _
      $region28: #{tpu_custom_call.1} parent=5 // pred_fallthru
        _
      %p359 = scmp.le.s32.totalorder 2, %s14
      // Predicated region
      $region37: #{tpu_custom_call.1} parent=5 // pred_check
        %p360 = pneg %p359
      $region38: #{tpu_custom_call.1} parent=5 // pred_check_branch
        %362 = sbr.rel (%p360) target = $region40
      $region39: #{tpu_custom_call.1} parent=5 // pred_region
        %s363 = ssub.s32 %s14, 2
        // Predicated region
        $region41: #{tpu_custom_call.1} parent=39 // pred_check
          %p364 = pneg %p106
        $region42: #{tpu_custom_call.1} parent=39 // pred_check_branch
          %366 = sbr.rel (%p364) target = $region44
        $region43: #{tpu_custom_call.1} parent=39 // pred_region
          %s367 = sand.u32 %s91, 1
          %s368 = scalar_lea.sflag [#allocation4], %s367
          %s369 = sand.u32 %s91, 1
          %s370 = smul.addr %s369, 8
          %s371 = scalar_lea.vmem [#allocation5], %s370
          %373 = dma.done %s368, 128
        $region44: #{tpu_custom_call.1} parent=39 // pred_fallthru
          _
      $region40: #{tpu_custom_call.1} parent=5 // pred_fallthru
        _
    $region6: #{tpu_custom_call.1} parent=1 // loop_footer
      %s18 = sadd.s32 1, %s14
    $region7: #{tpu_custom_call.1} parent=1 // loop_footer_branch
      %13 = sbr.rel target = $region3
    $region8: #{tpu_custom_call.1} parent=1 // loop_exit
      _
    %374 = vsyncpa [#allocation3], 1
    %s375 = scalar_lea.sflag [#allocation3], 1
    %376 = vsyncpa %s375, 1
    %377 = vsyncpa [#allocation4], 1
    %s378 = scalar_lea.sflag [#allocation4], 1
    %379 = vsyncpa %s378, 1

</llo_original>
